<compile_context>
chip_gen: v6e
topology: v6e:2x2x1
jax: 0.10.0
libtpu: 0.0.40
codegen_flags: <defaults>
</compile_context>

<pallas_src>
import functools

import jax
import jax.numpy as jnp
from jax.experimental import pallas as pl
from jax.experimental.pallas import tpu as pltpu


# ----------------------------------------------------------------------------
# Kernel: fused LayerNorm(C) + subtract per-channel mean over the seq axis
# ----------------------------------------------------------------------------

def _my_layernorm_kernel(x_ref, gamma_ref, beta_ref, o_ref, *, eps, inv_seq_len):
    # x_ref/o_ref: [BB, L, C] (model dtype)   gamma_ref/beta_ref: [1, C] f32
    x = x_ref[...].astype(jnp.float32)                  # upcast once after load

    # --- LayerNorm over the channel (lane) axis, f32 stats, single pass -----
    mu = jnp.mean(x, axis=-1, keepdims=True)            # XLU cross-lane reduce
    var = jnp.mean(x * x, axis=-1, keepdims=True) - mu * mu
    inv = jax.lax.rsqrt(var + eps)                      # EUP
    x_hat = (x - mu) * inv * gamma_ref[...] + beta_ref[...]   # (1,C) broadcast

    # --- subtract per-channel mean over the sequence axis (PyTorch dim=1) ---
    seq_mean = jnp.sum(x_hat, axis=1, keepdims=True) * inv_seq_len   # [BB,1,C]
    o_ref[...] = (x_hat - seq_mean).astype(o_ref.dtype)              # downcast


# ----------------------------------------------------------------------------
# Wrapper
# ----------------------------------------------------------------------------

def _pick_batch_block(B, per_batch_bytes, target_bytes=1 << 20):
    """Largest divisor of B whose (BB, L, C) block stays <= target_bytes."""
    bb = 1
    for d in range(1, B + 1):
        if B % d == 0 and d * per_batch_bytes <= target_bytes:
            bb = d
    return bb


def my_layernorm(x, gamma, beta, eps=1e-5):
    B, L, C = x.shape
    itemsize = jnp.dtype(x.dtype).itemsize
    # L and C must stay full-dim blocks (seq mean is over the whole sequence);
    # only the batch axis is blocked.
    bb = _pick_batch_block(B, L * C * itemsize)
    grid = (B // bb,)

    gamma2 = gamma.reshape(1, C).astype(jnp.float32)
    beta2 = beta.reshape(1, C).astype(jnp.float32)

    return pl.pallas_call(
        functools.partial(_my_layernorm_kernel, eps=eps, inv_seq_len=1.0 / L),
        out_shape=jax.ShapeDtypeStruct((B, L, C), x.dtype),
        grid=grid,
        in_specs=[
            pl.BlockSpec((bb, L, C), lambda b: (b, 0, 0)),
            pl.BlockSpec((1, C), lambda b: (0, 0)),
            pl.BlockSpec((1, C), lambda b: (0, 0)),
        ],
        out_specs=pl.BlockSpec((bb, L, C), lambda b: (b, 0, 0)),
        compiler_params=pltpu.CompilerParams(
            # "parallel" batch axis: megacore sharding on v7x, harmless on
            # single-TC chips.  32 MiB scoped VMEM: above v5e's 16 MiB default,
            # comfortably inside v7x's 64 MiB physical VMEM, and far above the
            # ~5 MiB working set implied by the 1 MiB block cap.
            dimension_semantics=("parallel",),
            vmem_limit_bytes=32 * 1024 * 1024,
        ),
    )(x, gamma2, beta2)


# ----------------------------------------------------------------------------
# Pure-JAX reference (mirrors the PyTorch module exactly, in f32)
# ----------------------------------------------------------------------------

def my_layernorm_ref(x, gamma, beta, eps=1e-5):
    mu = jnp.mean(x, axis=-1, keepdims=True)
    var = jnp.mean((x - mu) ** 2, axis=-1, keepdims=True)
    x_hat = (x - mu) / jnp.sqrt(var + eps) * gamma + beta
    bias = jnp.mean(x_hat, axis=1, keepdims=True)        # mean over seq dim
    return x_hat - bias


# ----------------------------------------------------------------------------
# Main
# ----------------------------------------------------------------------------

if __name__ == "__main__":
    B, L, C = 4, 16, 128          # batch, seq, channels (lane-dense C)

    key = jax.random.PRNGKey(0)
    kx, kg, kb = jax.random.split(key, 3)
    # Model dtype bf16 (halves HBM bytes); stats stay f32 inside the kernel.
    x = jax.random.normal(kx, (B, L, C), dtype=jnp.float32).astype(jnp.bfloat16)
    gamma = (1.0 + 0.1 * jax.random.normal(kg, (C,))).astype(jnp.float32)
    beta = (0.1 * jax.random.normal(kb, (C,))).astype(jnp.float32)

    fwd = jax.jit(my_layernorm)
    out = fwd(x, gamma, beta)
    jax.block_until_ready(out)

    ref = my_layernorm_ref(x.astype(jnp.float32), gamma, beta)

    assert out.shape == (B, L, C)
    assert out.dtype == x.dtype
    out_f32 = out.astype(jnp.float32)
    assert bool(jnp.all(jnp.isfinite(out_f32)))
    max_err = float(jnp.max(jnp.abs(out_f32 - ref)))
    # bf16 I/O -> loosened tolerance vs. the f32 reference.
    assert max_err < 2e-2, max_err

    print("KERNEL_OK")
</pallas_src>

<mosaic_0001>
module attributes {stable_mosaic.version = 11 : i64} {
  func.func @_my_layernorm_kernel(%arg0: i32, %arg1: memref<4x16x128xbf16, #tpu.memory_space<vmem>>, %arg2: memref<1x128xf32, #tpu.memory_space<vmem>>, %arg3: memref<1x128xf32, #tpu.memory_space<vmem>>, %arg4: memref<4x16x128xbf16, #tpu.memory_space<vmem>>) attributes {dimension_semantics = [#tpu.dimension_semantics<parallel>], iteration_bounds = array<i64: 1>, scalar_prefetch = 0 : i64, scratch_operands = 0 : i64, tpu.core_type = #tpu.core_type<tc>, window_params = [{transform_indices = @transform_0, window_bounds = array<i64: 4, 16, 128>}, {pipeline_mode = #tpu.pipeline_mode<synchronous>, transform_indices = @transform_1, window_bounds = array<i64: 1, 128>}, {pipeline_mode = #tpu.pipeline_mode<synchronous>, transform_indices = @transform_2, window_bounds = array<i64: 1, 128>}, {transform_indices = @transform_3, window_bounds = array<i64: 4, 16, 128>}]} {
    %c0 = arith.constant 0 : index
    %c0_0 = arith.constant 0 : index
    %c0_1 = arith.constant 0 : index
    %0 = vector.load %arg1[%c0, %c0_0, %c0_1] : memref<4x16x128xbf16, #tpu.memory_space<vmem>>, vector<4x16x128xbf16>
    %1 = arith.extf %0 : vector<4x16x128xbf16> to vector<4x16x128xf32>
    %cst = arith.constant dense<0.000000e+00> : vector<4x16xf32>
    %2 = vector.multi_reduction <add>, %1, %cst [2] : vector<4x16x128xf32> to vector<4x16xf32>
    %3 = vector.shape_cast %2 : vector<4x16xf32> to vector<4x16x1xf32>
    %cst_2 = arith.constant 1.280000e+02 : f32
    %4 = vector.broadcast %cst_2 : f32 to vector<4x16x1xf32>
    %5 = arith.divf %3, %4 : vector<4x16x1xf32>
    %6 = arith.mulf %1, %1 : vector<4x16x128xf32>
    %cst_3 = arith.constant dense<0.000000e+00> : vector<4x16xf32>
    %7 = vector.multi_reduction <add>, %6, %cst_3 [2] : vector<4x16x128xf32> to vector<4x16xf32>
    %8 = vector.shape_cast %7 : vector<4x16xf32> to vector<4x16x1xf32>
    %cst_4 = arith.constant 1.280000e+02 : f32
    %9 = vector.broadcast %cst_4 : f32 to vector<4x16x1xf32>
    %10 = arith.divf %8, %9 : vector<4x16x1xf32>
    %11 = arith.mulf %5, %5 : vector<4x16x1xf32>
    %12 = arith.subf %10, %11 : vector<4x16x1xf32>
    %cst_5 = arith.constant 9.99999974E-6 : f32
    %13 = vector.broadcast %cst_5 : f32 to vector<4x16x1xf32>
    %14 = arith.addf %12, %13 : vector<4x16x1xf32>
    %15 = math.rsqrt %14 : vector<4x16x1xf32>
    %16 = vector.broadcast %5 : vector<4x16x1xf32> to vector<4x16x128xf32>
    %17 = arith.subf %1, %16 : vector<4x16x128xf32>
    %18 = vector.broadcast %15 : vector<4x16x1xf32> to vector<4x16x128xf32>
    %19 = arith.mulf %17, %18 : vector<4x16x128xf32>
    %c0_6 = arith.constant 0 : index
    %c0_7 = arith.constant 0 : index
    %20 = vector.load %arg2[%c0_6, %c0_7] : memref<1x128xf32, #tpu.memory_space<vmem>>, vector<1x128xf32>
    %21 = vector.shape_cast %20 : vector<1x128xf32> to vector<1x1x128xf32>
    %22 = vector.broadcast %21 : vector<1x1x128xf32> to vector<4x16x128xf32>
    %23 = arith.mulf %19, %22 : vector<4x16x128xf32>
    %c0_8 = arith.constant 0 : index
    %c0_9 = arith.constant 0 : index
    %24 = vector.load %arg3[%c0_8, %c0_9] : memref<1x128xf32, #tpu.memory_space<vmem>>, vector<1x128xf32>
    %25 = vector.shape_cast %24 : vector<1x128xf32> to vector<1x1x128xf32>
    %26 = vector.broadcast %25 : vector<1x1x128xf32> to vector<4x16x128xf32>
    %27 = arith.addf %23, %26 : vector<4x16x128xf32>
    %cst_10 = arith.constant dense<0.000000e+00> : vector<4x128xf32>
    %28 = vector.multi_reduction <add>, %27, %cst_10 [1] : vector<4x16x128xf32> to vector<4x128xf32>
    %29 = vector.shape_cast %28 : vector<4x128xf32> to vector<4x1x128xf32>
    %cst_11 = arith.constant 6.250000e-02 : f32
    %30 = vector.broadcast %cst_11 : f32 to vector<4x1x128xf32>
    %31 = arith.mulf %29, %30 : vector<4x1x128xf32>
    %32 = vector.broadcast %31 : vector<4x1x128xf32> to vector<4x16x128xf32>
    %33 = arith.subf %27, %32 : vector<4x16x128xf32>
    %34 = arith.truncf %33 : vector<4x16x128xf32> to vector<4x16x128xbf16>
    %c0_12 = arith.constant 0 : index
    %c0_13 = arith.constant 0 : index
    %c0_14 = arith.constant 0 : index
    %35 = vector.load %arg4[%c0_12, %c0_13, %c0_14] : memref<4x16x128xbf16, #tpu.memory_space<vmem>>, vector<4x16x128xbf16>
    tpu.vector_store %arg4[%c0_12, %c0_13, %c0_14], %34 {strides = array<i32>} : memref<4x16x128xbf16, #tpu.memory_space<vmem>>, vector<4x16x128xbf16>,
    return
  }
  func.func @transform_0(%arg0: i32) -> (i32, i32, i32) {
    %c0_i32 = arith.constant 0 : i32
    %c0_i32_0 = arith.constant 0 : i32
    %c0_i32_1 = arith.constant 0 : i32
    return %arg0, %c0_i32, %c0_i32_0 : i32, i32, i32
  }
  func.func @transform_1(%arg0: i32) -> (i32, i32) {
    %c0_i32 = arith.constant 0 : i32
    %c0_i32_0 = arith.constant 0 : i32
    %c0_i32_1 = arith.constant 0 : i32
    return %c0_i32, %c0_i32_0 : i32, i32
  }
  func.func @transform_2(%arg0: i32) -> (i32, i32) {
    %c0_i32 = arith.constant 0 : i32
    %c0_i32_0 = arith.constant 0 : i32
    %c0_i32_1 = arith.constant 0 : i32
    return %c0_i32, %c0_i32_0 : i32, i32
  }
  func.func @transform_3(%arg0: i32) -> (i32, i32, i32) {
    %c0_i32 = arith.constant 0 : i32
    %c0_i32_0 = arith.constant 0 : i32
    %c0_i32_1 = arith.constant 0 : i32
    return %arg0, %c0_i32, %c0_i32_0 : i32, i32, i32
  }
}

</mosaic_0001>

<llo_original>
// kernel: my_layernorm.1
$region0: #{my_layernorm.1}
  #allocation0 [shape = 'u32[]', space=smem, size = 0x4, offset = 0x4, fixed_abs, tag = 'smem constant byte address 0x4 - core index']
  #allocation1 [shape = 'u32[144,128]{1,0:T(1,128)}', space=vmem, size = 0x12000, scoped, tag = 'internal scratch']
  %s0 = inlined_call_operand.hbm [shape: bf16[4,16,128], index: 0, kind: input, shape index: {}]
  %s1 = inlined_call_operand.vmem [shape: f32[1,128], index: 1, kind: input, shape index: {}]
  %s2 = inlined_call_operand.vmem [shape: f32[1,128], index: 2, kind: input, shape index: {}]
  %s3 = inlined_call_operand.hbm [shape: bf16[4,16,128], index: 3, kind: output, shape index: {}]
  %s4 = sld [smem:[#allocation0]]
  $region26: #{my_layernorm.1} parent=0
    _
  %s6 = ssub.s32 1, %s4
  %s7 = scalar_select 0, %s6, %s4
  $region1: #{my_layernorm.1} parent=0
    #allocation2 [shape = 'u8[16384]{0}', space=vmem, size = 0x4000, scoped, tag = 'input window, operand 0, single buffered']
    #allocation3 [shape = 's32[1]{0}', space=sflag, size = 0x4, scoped, tag = 'scoped memory for my_layernorm.1']
    #allocation4 [shape = 's32[1]{0}', space=sflag, size = 0x4, scoped, tag = 'scoped memory for my_layernorm.1']
    #allocation5 [shape = 'u8[16384]{0}', space=vmem, size = 0x4000, scoped, tag = 'output window, operand 0, single buffered']
    %8 = vsyncpa [#allocation3], 0
    %9 = vsyncpa [#allocation4], 0
    // Predicated region
    $region2: #{my_layernorm.1} parent=1 // pred_check
      _
    $region3: #{my_layernorm.1} parent=1 // pred_check_branch
      %11 = sbr.rel (0) target = $region5
    $region4: #{my_layernorm.1} parent=1 // pred_region
      %s13 = ssub.s32 512, 512
      %14 = vsyncadd [#allocation3], %s13
      %s15 = sshll.u32 [#allocation2], 4
      %s16 = int_to_ptr.vmem [resolvable:$true] %s15
      %21 = dma.hbm_to_vmem [thread:$0]  %s0, 512, %s16, [#allocation3], 64, 64, 4
    $region5: #{my_layernorm.1} parent=1 // pred_fallthru
      _
    // Predicated region
    $region6: #{my_layernorm.1} parent=1 // pred_check
      _
    $region7: #{my_layernorm.1} parent=1 // pred_check_branch
      %23 = sbr.rel (0) target = $region9
    $region8: #{my_layernorm.1} parent=1 // pred_region
      _
    $region9: #{my_layernorm.1} parent=1 // pred_fallthru
      _
    // Predicated region
    $region10: #{my_layernorm.1} parent=1 // pred_check
      _
    $region11: #{my_layernorm.1} parent=1 // pred_check_branch
      %25 = sbr.rel (0) target = $region13
    $region12: #{my_layernorm.1} parent=1 // pred_region
      _
    $region13: #{my_layernorm.1} parent=1 // pred_fallthru
      _
    // Predicated region
    $region14: #{my_layernorm.1} parent=1 // pred_check
      _
    $region15: #{my_layernorm.1} parent=1 // pred_check_branch
      %27 = sbr.rel (0) target = $region17
    $region16: #{my_layernorm.1} parent=1 // pred_region
      %28 = dma.done [#allocation3], 512
    $region17: #{my_layernorm.1} parent=1 // pred_fallthru
      _
    %v29 = vld [vmem:[#allocation2] sm:$0xf]
    %v30 = vld [vmem:[#allocation2 + $0x4] sm:$0xf]
    %v31 = vld [vmem:[#allocation2 + $0x8] sm:$0xf]
    %v32 = vld [vmem:[#allocation2 + $0xc] sm:$0xf]
    %v33 = vld [vmem:[#allocation2 + $0x10] sm:$0xf]
    %v34 = vld [vmem:[#allocation2 + $0x14] sm:$0xf]
    %v35 = vld [vmem:[#allocation2 + $0x18] sm:$0xf]
    %v36 = vld [vmem:[#allocation2 + $0x1c] sm:$0xf]
    %v37 = vunpack.c.l.bf16 %v29
    %v38 = vunpack.c.l.bf16 %v30
    %v39 = vunpack.c.l.bf16 %v31
    %v40 = vunpack.c.l.bf16 %v32
    %v41 = vunpack.c.l.bf16 %v33
    %v42 = vunpack.c.l.bf16 %v34
    %v43 = vunpack.c.l.bf16 %v35
    %v44 = vunpack.c.l.bf16 %v36
    %45 = vadd.xlane.f32.xlu0 %v37
    %v46 = vpop.xlane.xlu0 %45
    %47 = vadd.xlane.f32.xlu0 %v38
    %v48 = vpop.xlane.xlu0 %47
    %49 = vadd.xlane.f32.xlu0 %v39
    %v50 = vpop.xlane.xlu0 %49
    %51 = vadd.xlane.f32.xlu0 %v40
    %v52 = vpop.xlane.xlu0 %51
    %53 = vadd.xlane.f32.xlu0 %v41
    %v54 = vpop.xlane.xlu0 %53
    %55 = vadd.xlane.f32.xlu0 %v42
    %v56 = vpop.xlane.xlu0 %55
    %57 = vadd.xlane.f32.xlu0 %v43
    %v58 = vpop.xlane.xlu0 %57
    %59 = vadd.xlane.f32.xlu0 %v44
    %v60 = vpop.xlane.xlu0 %59
    %v61 = vrcp.pop 128.0
    %v62 = vmul.f32 %v46, %v61
    %v63 = vmul.f32 %v48, %v61
    %v64 = vmul.f32 %v50, %v61
    %v65 = vmul.f32 %v52, %v61
    %v66 = vmul.f32 %v54, %v61
    %v67 = vmul.f32 %v56, %v61
    %v68 = vmul.f32 %v58, %v61
    %v69 = vmul.f32 %v60, %v61
    %v70 = vmul.f32 %v37, %v37
    %v71 = vmul.f32 %v38, %v38
    %v72 = vmul.f32 %v39, %v39
    %v73 = vmul.f32 %v40, %v40
    %v74 = vmul.f32 %v41, %v41
    %v75 = vmul.f32 %v42, %v42
    %v76 = vmul.f32 %v43, %v43
    %v77 = vmul.f32 %v44, %v44
    %78 = vadd.xlane.f32.xlu0 %v70
    %v79 = vpop.xlane.xlu0 %78
    %80 = vadd.xlane.f32.xlu0 %v71
    %v81 = vpop.xlane.xlu0 %80
    %82 = vadd.xlane.f32.xlu0 %v72
    %v83 = vpop.xlane.xlu0 %82
    %84 = vadd.xlane.f32.xlu0 %v73
    %v85 = vpop.xlane.xlu0 %84
    %86 = vadd.xlane.f32.xlu0 %v74
    %v87 = vpop.xlane.xlu0 %86
    %88 = vadd.xlane.f32.xlu0 %v75
    %v89 = vpop.xlane.xlu0 %88
    %90 = vadd.xlane.f32.xlu0 %v76
    %v91 = vpop.xlane.xlu0 %90
    %92 = vadd.xlane.f32.xlu0 %v77
    %v93 = vpop.xlane.xlu0 %92
    %v94 = vmul.f32 %v79, %v61
    %v95 = vmul.f32 %v81, %v61
    %v96 = vmul.f32 %v83, %v61
    %v97 = vmul.f32 %v85, %v61
    %v98 = vmul.f32 %v87, %v61
    %v99 = vmul.f32 %v89, %v61
    %v100 = vmul.f32 %v91, %v61
    %v101 = vmul.f32 %v93, %v61
    %v102 = vmul.f32 %v62, %v62
    %v103 = vmul.f32 %v63, %v63
    %v104 = vmul.f32 %v64, %v64
    %v105 = vmul.f32 %v65, %v65
    %v106 = vmul.f32 %v66, %v66
    %v107 = vmul.f32 %v67, %v67
    %v108 = vmul.f32 %v68, %v68
    %v109 = vmul.f32 %v69, %v69
    %v110 = vsub.f32 %v94, %v102
    %v111 = vsub.f32 %v95, %v103
    %v112 = vsub.f32 %v96, %v104
    %v113 = vsub.f32 %v97, %v105
    %v114 = vsub.f32 %v98, %v106
    %v115 = vsub.f32 %v99, %v107
    %v116 = vsub.f32 %v100, %v108
    %v117 = vsub.f32 %v101, %v109
    %v118 = vadd.f32 %v110, 1e-05
    %v119 = vadd.f32 %v111, 1e-05
    %v120 = vadd.f32 %v112, 1e-05
    %v121 = vadd.f32 %v113, 1e-05
    %v122 = vadd.f32 %v114, 1e-05
    %v123 = vadd.f32 %v115, 1e-05
    %v124 = vadd.f32 %v116, 1e-05
    %v125 = vadd.f32 %v117, 1e-05
    %v126 = vrsqrt.pop %v118
    %v127 = vrsqrt.pop %v119
    %v128 = vrsqrt.pop %v120
    %v129 = vrsqrt.pop %v121
    %v130 = vrsqrt.pop %v122
    %v131 = vrsqrt.pop %v123
    %v132 = vrsqrt.pop %v124
    %v133 = vrsqrt.pop %v125
    %v134 = vsub.f32 %v37, %v62
    %v135 = vsub.f32 %v38, %v63
    %v136 = vsub.f32 %v39, %v64
    %v137 = vsub.f32 %v40, %v65
    %v138 = vsub.f32 %v41, %v66
    %v139 = vsub.f32 %v42, %v67
    %v140 = vsub.f32 %v43, %v68
    %v141 = vsub.f32 %v44, %v69
    %v142 = vmul.f32 %v134, %v126
    %v143 = vmul.f32 %v135, %v127
    %v144 = vmul.f32 %v136, %v128
    %v145 = vmul.f32 %v137, %v129
    %v146 = vmul.f32 %v138, %v130
    %v147 = vmul.f32 %v139, %v131
    %v148 = vmul.f32 %v140, %v132
    %v149 = vmul.f32 %v141, %v133
    %v150 = vld [vmem:[%s1] sm:$0x1]
    %v152 = vlaneseq
    %v153 = vshrl.u32 %v152, 7
    %v154 = vsub.s32 0, %v153
    %v155 = vrot.slane %v150, %v154
    %v157 = vmul.f32 %v142, %v155
    %v158 = vmul.f32 %v143, %v155
    %v159 = vmul.f32 %v144, %v155
    %v160 = vmul.f32 %v145, %v155
    %v161 = vmul.f32 %v146, %v155
    %v162 = vmul.f32 %v147, %v155
    %v163 = vmul.f32 %v148, %v155
    %v164 = vmul.f32 %v149, %v155
    %v165 = vld [vmem:[%s2] sm:$0x1]
    %v167 = vlaneseq
    %v168 = vshrl.u32 %v167, 7
    %v169 = vsub.s32 0, %v168
    %v170 = vrot.slane %v165, %v169
    %v172 = vadd.f32 %v157, %v170
    %v173 = vadd.f32 %v158, %v170
    %v174 = vadd.f32 %v159, %v170
    %v175 = vadd.f32 %v160, %v170
    %v176 = vadd.f32 %v161, %v170
    %v177 = vadd.f32 %v162, %v170
    %v178 = vadd.f32 %v163, %v170
    %v179 = vadd.f32 %v164, %v170
    %v180 = vadd.f32 %v172, %v173
    %v181 = vrot.slane %v180, 4
    %v182 = vadd.f32 %v180, %v181
    %v183 = vrot.slane %v182, 2
    %v184 = vadd.f32 %v182, %v183
    %v185 = vrot.slane %v184, 1
    %v186 = vadd.f32 %v184, %v185
    %v187 = vadd.f32 %v174, %v175
    %v188 = vrot.slane %v187, 4
    %v189 = vadd.f32 %v187, %v188
    %v190 = vrot.slane %v189, 2
    %v191 = vadd.f32 %v189, %v190
    %v192 = vrot.slane %v191, 1
    %v193 = vadd.f32 %v191, %v192
    %v194 = vadd.f32 %v176, %v177
    %v195 = vrot.slane %v194, 4
    %v196 = vadd.f32 %v194, %v195
    %v197 = vrot.slane %v196, 2
    %v198 = vadd.f32 %v196, %v197
    %v199 = vrot.slane %v198, 1
    %v200 = vadd.f32 %v198, %v199
    %v201 = vadd.f32 %v178, %v179
    %v202 = vrot.slane %v201, 4
    %v203 = vadd.f32 %v201, %v202
    %v204 = vrot.slane %v203, 2
    %v205 = vadd.f32 %v203, %v204
    %v206 = vrot.slane %v205, 1
    %v207 = vadd.f32 %v205, %v206
    %v208 = vmul.f32 %v186, 0.0625
    %v209 = vmul.f32 %v193, 0.0625
    %v210 = vmul.f32 %v200, 0.0625
    %v211 = vmul.f32 %v207, 0.0625
    %v212 = vsub.f32 %v172, %v208
    %v213 = vsub.f32 %v173, %v208
    %v214 = vsub.f32 %v174, %v209
    %v215 = vsub.f32 %v175, %v209
    %v216 = vsub.f32 %v176, %v210
    %v217 = vsub.f32 %v177, %v210
    %v218 = vsub.f32 %v178, %v211
    %v219 = vsub.f32 %v179, %v211
    %v220 = vpack.c.bf16 %v213, %v212
    %v221 = vpack.c.bf16 %v215, %v214
    %v222 = vpack.c.bf16 %v217, %v216
    %v223 = vpack.c.bf16 %v219, %v218
    %v228 = vunpack.c.l.b16 %v220
    %v229 = vunpack.c.h.b16 %v220
    %v230 = vunpack.c.l.b16 %v221
    %v231 = vunpack.c.h.b16 %v221
    %v232 = vunpack.c.l.b16 %v222
    %v233 = vunpack.c.h.b16 %v222
    %v234 = vunpack.c.l.b16 %v223
    %v235 = vunpack.c.h.b16 %v223
    %v236 = vpack.c.b16 %v228, %v228
    %v237 = vpack.c.b16 %v229, %v229
    %v238 = vpack.c.b16 %v230, %v230
    %v239 = vpack.c.b16 %v231, %v231
    %v240 = vpack.c.b16 %v232, %v232
    %v241 = vpack.c.b16 %v233, %v233
    %v242 = vpack.c.b16 %v234, %v234
    %v243 = vpack.c.b16 %v235, %v235
    %252 = vst [vmem:[#allocation5] sm:$0xf] %v236
    %253 = vst [vmem:[#allocation5 + $0x4] sm:$0xf] %v237
    %254 = vst [vmem:[#allocation5 + $0x8] sm:$0xf] %v238
    %255 = vst [vmem:[#allocation5 + $0xc] sm:$0xf] %v239
    %256 = vst [vmem:[#allocation5 + $0x10] sm:$0xf] %v240
    %257 = vst [vmem:[#allocation5 + $0x14] sm:$0xf] %v241
    %258 = vst [vmem:[#allocation5 + $0x18] sm:$0xf] %v242
    %259 = vst [vmem:[#allocation5 + $0x1c] sm:$0xf] %v243
    // Predicated region
    $region18: #{my_layernorm.1} parent=1 // pred_check
      _
    $region19: #{my_layernorm.1} parent=1 // pred_check_branch
      %261 = sbr.rel (0) target = $region21
    $region20: #{my_layernorm.1} parent=1 // pred_region
      %s263 = ssub.s32 512, 512
      %264 = vsyncadd [#allocation4], %s263
      %s265 = sshll.u32 [#allocation5], 4
      %s266 = int_to_ptr.vmem [resolvable:$true] %s265
      %271 = dma.vmem_to_hbm [thread:$0]  %s266, 512, %s3, [#allocation4], 64, 64, 4
    $region21: #{my_layernorm.1} parent=1 // pred_fallthru
      _
    // Predicated region
    $region22: #{my_layernorm.1} parent=1 // pred_check
      _
    $region23: #{my_layernorm.1} parent=1 // pred_check_branch
      %273 = sbr.rel (0) target = $region25
    $region24: #{my_layernorm.1} parent=1 // pred_region
      %274 = dma.done [#allocation4], 512
    $region25: #{my_layernorm.1} parent=1 // pred_fallthru
      _
    %275 = vsyncpa [#allocation3], 1
    %276 = vsyncpa [#allocation4], 1

</llo_original>
